<compile_context>
chip_gen: v7x
topology: tpu7x:2x2x1
jax: 0.10.0
libtpu: 0.0.40
codegen_flags: <defaults>
</compile_context>

<pallas_src>
import functools

import jax
import jax.numpy as jnp
from jax import lax
from jax.experimental import pallas as pl
from jax.experimental.pallas import tpu as pltpu


def _round_up(x, m):
    return (x + m - 1) // m * m


# ----------------------------------------------------------------------------
# Fused rollout kernel: one kernel invocation == the entire recursive forecast.
# ----------------------------------------------------------------------------
def _rollout_kernel(x_ref, inst_ref, w_x_ref, w_inst_ref, b_ref, o_ref, *,
                    seq_len, pred_len, n_time, n_calls, p_pad):
    # Rollout-invariant part of the linear head, computed ONCE (hoisted out of
    # the per-step body): base = instance_features @ W_inst + b.
    base = jnp.dot(inst_ref[...], w_inst_ref[...],
                   preferred_element_type=jnp.float32) + b_ref[...]  # (B_pad, P_pad)

    w_x = w_x_ref[...]        # (S*(1+n_time), P_pad) bf16, resident for the rollout

    def step(i, x):
        # x: (B_pad, S*(1+n_time)) f32 rolling window, laid out [seq | time_flat].
        out = base + jnp.dot(x.astype(w_x.dtype), w_x,
                             preferred_element_type=jnp.float32)      # (B_pad, P_pad)

        # Resident-output store: 128-lane-aligned block, no per-step HBM DMA.
        col = pl.multiple_of(i * p_pad, 128)
        o_ref[:, pl.ds(col, p_pad)] = out

        # Roll the window forward for the next call (f32 elementwise path; the
        # whole window is < one vreg row wide at these feature sizes).
        seq_part = x[:, :seq_len]                       # (B_pad, S)
        time_part = x[:, seq_len:]                      # (B_pad, S*n_time)
        new_seq = jnp.concatenate(
            [seq_part[:, pred_len:], out[:, :pred_len]], axis=-1)
        # TODO(synk): predict_future_time_features is undefined in the reference;
        # stand-in repeats the last observed time-feature row.
        last = time_part[:, (seq_len - 1) * n_time:]    # (B_pad, n_time)
        new_time = jnp.concatenate(
            [time_part[:, pred_len * n_time:], jnp.tile(last, (1, pred_len))],
            axis=-1)
        return jnp.concatenate([new_seq, new_time], axis=-1)

    # n_calls is static; unroll fully when short so the LLO scheduler sees it.
    lax.fori_loop(0, n_calls, step, x_ref[...], unroll=n_calls <= 8)


# ----------------------------------------------------------------------------
# Wrapper: pads to (8, 128)-friendly shapes and runs the fused rollout once.
# ----------------------------------------------------------------------------
def _forecast_impl(params, sequence, instance_features, time_features, *, n_steps):
    B, S, _ = sequence.shape
    n_time = time_features.shape[-1]
    n_inst = instance_features.shape[-1]
    P = params["w_seq"].shape[1]          # prediction_length
    assert P <= S, "window roll assumes prediction_length <= seq_len"

    B_pad = _round_up(B, 8)               # f32 sublane
    P_pad = _round_up(P, 128)             # lane-dense per-step output block
    NI_pad = _round_up(n_inst, 128)
    n_calls = -(-n_steps // P)            # ceil

    f32, bf16 = jnp.float32, jnp.bfloat16

    # Rolling window initial value: [sequence | flattened time features], f32.
    seq2d = sequence[:, :, 0].astype(f32)
    time2d = time_features.reshape(B, S * n_time).astype(f32)
    x0 = jnp.pad(jnp.concatenate([seq2d, time2d], axis=-1),
                 ((0, B_pad - B), (0, 0)))                          # (B_pad, W)

    # Zero-padded operands (padded rows/lanes hit zero weights -> no pollution).
    inst_p = jnp.pad(instance_features.astype(f32),
                     ((0, B_pad - B), (0, NI_pad - n_inst))).astype(bf16)
    w_x = jnp.concatenate([params["w_seq"], params["w_time"]], axis=0).astype(f32)
    w_x_p = jnp.pad(w_x, ((0, 0), (0, P_pad - P))).astype(bf16)
    w_inst_p = jnp.pad(params["w_inst"].astype(f32),
                       ((0, NI_pad - n_inst), (0, P_pad - P))).astype(bf16)
    b_p = jnp.pad(params["b"].astype(f32), (0, P_pad - P))[None, :]

    # Explicit VMEM budget (review: v7x has 64 MiB; default scoped limit 32 MiB).
    out_bytes = B_pad * n_calls * P_pad * 4
    in_bytes = sum(int(a.size) * a.dtype.itemsize
                   for a in (x0, inst_p, w_x_p, w_inst_p, b_p))
    vmem_limit = int(min(128 << 20, max(16 << 20, 4 * (in_bytes + out_bytes))))

    out = pl.pallas_call(
        functools.partial(_rollout_kernel, seq_len=S, pred_len=P, n_time=n_time,
                          n_calls=n_calls, p_pad=P_pad),
        out_shape=jax.ShapeDtypeStruct((B_pad, n_calls * P_pad), jnp.float32),
        compiler_params=pltpu.CompilerParams(vmem_limit_bytes=vmem_limit),
    )(x0, inst_p, w_x_p, w_inst_p, b_p)

    # Drop lane padding and trim to the requested batch / number of steps.
    out = out.reshape(B_pad, n_calls, P_pad)[:, :, :P]
    return out.reshape(B_pad, n_calls * P)[:B, :n_steps]


forecast = jax.jit(_forecast_impl, static_argnames=("n_steps",))


def model_forward(params, sequence, instance_features, time_features):
    """Single `forward` call (one rollout step) through the fused kernel."""
    P = params["w_seq"].shape[1]
    return forecast(params, sequence, instance_features, time_features, n_steps=P)


# ----------------------------------------------------------------------------
# Pure-JAX reference (mirrors Model.forecast with normalizer = None)
# ----------------------------------------------------------------------------
def forecast_ref(params, sequence, instance_features, time_features, n_steps):
    B, S, _ = sequence.shape
    n_time = time_features.shape[-1]
    P = params["w_seq"].shape[1]
    seq = sequence[:, :, 0]
    timef = time_features.reshape(B, S * n_time)
    preds, steps = [], 0
    while steps < n_steps:
        out = (seq @ params["w_seq"] + timef @ params["w_time"]
               + instance_features @ params["w_inst"] + params["b"][None, :])
        use = min(P, n_steps - steps)
        preds.append(out[:, :use])
        steps += use
        if steps >= n_steps:
            break
        seq = jnp.concatenate([seq[:, P:], out[:, :P]], axis=-1)
        last = timef[:, (S - 1) * n_time:]
        future = jnp.concatenate([last] * P, axis=-1)
        timef = jnp.concatenate([timef[:, P * n_time:], future], axis=-1)
    return jnp.concatenate(preds, axis=1)


# TODO(synk): Model.save/load (torch checkpoint IO), Normalizer hooks and the
# abstract _build_model/forward have no Pallas equivalent and are omitted.


if __name__ == "__main__":
    batch = 2
    seq_len = 8
    n_time_features = 4
    n_instance_features = 3
    prediction_length = 4
    n_steps = 6   # exercises the recursive rollout (2 fused forward calls)

    key = jax.random.PRNGKey(0)
    k1, k2, k3, k4, k5, k6, k7 = jax.random.split(key, 7)

    sequence = jax.random.normal(k1, (batch, seq_len, 1), dtype=jnp.float32)
    instance_features = jax.random.normal(
        k2, (batch, n_instance_features), dtype=jnp.float32)
    time_features = jax.random.normal(
        k3, (batch, seq_len, n_time_features), dtype=jnp.float32)

    D = seq_len * (1 + n_time_features) + n_instance_features
    scale = 1.0 / jnp.sqrt(jnp.float32(D))
    params = {
        "w_seq": jax.random.normal(
            k4, (seq_len, prediction_length), dtype=jnp.float32) * scale,
        "w_time": jax.random.normal(
            k5, (seq_len * n_time_features, prediction_length),
            dtype=jnp.float32) * scale,
        "w_inst": jax.random.normal(
            k6, (n_instance_features, prediction_length),
            dtype=jnp.float32) * scale,
        "b": jax.random.normal(k7, (prediction_length,), dtype=jnp.float32) * 0.01,
    }

    # Single forward pass (one rollout step) through the fused Pallas kernel.
    out = model_forward(params, sequence, instance_features, time_features)
    jax.block_until_ready(out)
    assert out.shape == (batch, prediction_length)

    # Full recursive forecast — one pallas_call covering all rollout steps.
    predictions = forecast(params, sequence, instance_features, time_features,
                           n_steps=n_steps)
    jax.block_until_ready(predictions)
    assert predictions.shape == (batch, n_steps)

    # Numerical check against the pure-JAX (f32) reference rollout.
    ref = forecast_ref(params, sequence, instance_features, time_features, n_steps)
    assert jnp.allclose(predictions, ref, rtol=1e-2, atol=1e-2), (
        "kernel/reference mismatch")

    print("KERNEL_OK")
</pallas_src>

<mosaic_0001>
module attributes {stable_mosaic.version = 11 : i64} {
  func.func @_rollout_kernel(%arg0: memref<8x40xf32, #tpu.memory_space<vmem>>, %arg1: memref<8x128xbf16, #tpu.memory_space<vmem>>, %arg2: memref<40x128xbf16, #tpu.memory_space<vmem>>, %arg3: memref<128x128xbf16, #tpu.memory_space<vmem>>, %arg4: memref<1x128xf32, #tpu.memory_space<vmem>>, %arg5: memref<8x128xf32, #tpu.memory_space<vmem>>) attributes {dimension_semantics = [], scalar_prefetch = 0 : i64, scratch_operands = 0 : i64, tpu.core_type = #tpu.core_type<tc>} {
    %c0 = arith.constant 0 : index
    %c0_0 = arith.constant 0 : index
    %0 = vector.load %arg1[%c0, %c0_0] : memref<8x128xbf16, #tpu.memory_space<vmem>>, vector<8x128xbf16>
    %c0_1 = arith.constant 0 : index
    %c0_2 = arith.constant 0 : index
    %1 = vector.load %arg3[%c0_1, %c0_2] : memref<128x128xbf16, #tpu.memory_space<vmem>>, vector<128x128xbf16>
    %cst = arith.constant dense<0.000000e+00> : vector<8x128xf32>
    %2 = tpu.matmul %0, %1, %cst {dimension_numbers = #tpu.dot_dimension_numbers<[1], [0], [0], [1], [0, 0, 1, 1], [], []>} : vector<8x128xbf16>, vector<128x128xbf16>, vector<8x128xf32> -> vector<8x128xf32>
    %c0_3 = arith.constant 0 : index
    %c0_4 = arith.constant 0 : index
    %3 = vector.load %arg4[%c0_3, %c0_4] : memref<1x128xf32, #tpu.memory_space<vmem>>, vector<1x128xf32>
    %4 = vector.broadcast %3 : vector<1x128xf32> to vector<8x128xf32>
    %5 = arith.addf %2, %4 : vector<8x128xf32>
    %c0_5 = arith.constant 0 : index
    %c0_6 = arith.constant 0 : index
    %6 = vector.load %arg2[%c0_5, %c0_6] : memref<40x128xbf16, #tpu.memory_space<vmem>>, vector<40x128xbf16>
    %c0_7 = arith.constant 0 : index
    %c0_8 = arith.constant 0 : index
    %7 = vector.load %arg0[%c0_7, %c0_8] : memref<8x40xf32, #tpu.memory_space<vmem>>, vector<8x40xf32>
    %c0_i32 = arith.constant 0 : i32
    %8 = arith.truncf %7 : vector<8x40xf32> to vector<8x40xbf16>
    %cst_9 = arith.constant dense<0.000000e+00> : vector<8x128xf32>
    %9 = tpu.matmul %8, %6, %cst_9 {dimension_numbers = #tpu.dot_dimension_numbers<[1], [0], [0], [1], [0, 0, 1, 1], [], []>} : vector<8x40xbf16>, vector<40x128xbf16>, vector<8x128xf32> -> vector<8x128xf32>
    %10 = arith.addf %5, %9 : vector<8x128xf32>
    %c128_i32 = arith.constant 128 : i32
    %11 = arith.muli %c0_i32, %c128_i32 : i32
    %12 = tpu.assume_multiple %11, 128 : i32
    %c0_10 = arith.constant 0 : index
    %13 = arith.index_cast %12 : i32 to index
    %14 = vector.load %arg5[%c0_10, %13] : memref<8x128xf32, #tpu.memory_space<vmem>>, vector<8x128xf32>
    tpu.vector_store %arg5[%c0_10, %13], %10 {strides = array<i32>} : memref<8x128xf32, #tpu.memory_space<vmem>>, vector<8x128xf32>,
    %15 = vector.extract_strided_slice %7 {offsets = [0, 0], sizes = [8, 8], strides = [1, 1]} : vector<8x40xf32> to vector<8x8xf32>
    %16 = vector.extract_strided_slice %7 {offsets = [0, 8], sizes = [8, 32], strides = [1, 1]} : vector<8x40xf32> to vector<8x32xf32>
    %17 = vector.extract_strided_slice %15 {offsets = [0, 4], sizes = [8, 4], strides = [1, 1]} : vector<8x8xf32> to vector<8x4xf32>
    %18 = vector.extract_strided_slice %10 {offsets = [0, 0], sizes = [8, 4], strides = [1, 1]} : vector<8x128xf32> to vector<8x4xf32>
    %19 = tpu.concatenate %17, %18 in 1 : vector<8x4xf32>, vector<8x4xf32> -> vector<8x8xf32>
    %20 = vector.extract_strided_slice %16 {offsets = [0, 28], sizes = [8, 4], strides = [1, 1]} : vector<8x32xf32> to vector<8x4xf32>
    %21 = vector.extract_strided_slice %16 {offsets = [0, 16], sizes = [8, 16], strides = [1, 1]} : vector<8x32xf32> to vector<8x16xf32>
    %22 = tpu.concatenate %20, %20, %20, %20 in 1 : vector<8x4xf32>, vector<8x4xf32>, vector<8x4xf32>, vector<8x4xf32> -> vector<8x16xf32>
    %23 = tpu.concatenate %21, %22 in 1 : vector<8x16xf32>, vector<8x16xf32> -> vector<8x32xf32>
    %24 = tpu.concatenate %19, %23 in 1 : vector<8x8xf32>, vector<8x32xf32> -> vector<8x40xf32>
    %c1_i32 = arith.constant 1 : i32
    return
  }
}

</mosaic_0001>

<llo_original>
// kernel: _forecast_impl.1
$region0: #{_forecast_impl.1}
  #allocation0 [shape = 'u32[]', space=smem, size = 0x4, offset = 0x4, fixed_abs, tag = 'smem constant byte address 0x4 - core index']
  #allocation1 [shape = 'u32[144,128]{1,0:T(1,128)}', space=vmem, size = 0x12000, scoped, tag = 'internal scratch']
  %s0 = inlined_call_operand.vmem [shape: f32[8,40], index: 0, kind: input, shape index: {}]
  %s1 = inlined_call_operand.vmem [shape: bf16[8,128], index: 1, kind: input, shape index: {}]
  %s2 = inlined_call_operand.vmem [shape: bf16[40,128], index: 2, kind: input, shape index: {}]
  %s3 = inlined_call_operand.vmem [shape: bf16[128,128], index: 3, kind: input, shape index: {}]
  %s4 = inlined_call_operand.vmem [shape: f32[1,128], index: 4, kind: input, shape index: {}]
  %s5 = inlined_call_operand.vmem [shape: f32[8,128], index: 5, kind: output, shape index: {}]
  %s6 = sld [smem:[#allocation0]]
  $region30: #{_forecast_impl.1} parent=0
    _
  %s8 = ssub.s32 1, %s6
  %s9 = scalar_select 0, %s8, %s6
  // Predicated region
  $region2: #{_forecast_impl.1} parent=0 // pred_check
    _
  $region3: #{_forecast_impl.1} parent=0 // pred_check_branch
    %11 = sbr.rel (0) target = $region5
  $region4: #{_forecast_impl.1} parent=0 // pred_region
    _
  $region5: #{_forecast_impl.1} parent=0 // pred_fallthru
    _
  // Predicated region
  $region6: #{_forecast_impl.1} parent=0 // pred_check
    _
  $region7: #{_forecast_impl.1} parent=0 // pred_check_branch
    %13 = sbr.rel (0) target = $region9
  $region8: #{_forecast_impl.1} parent=0 // pred_region
    _
  $region9: #{_forecast_impl.1} parent=0 // pred_fallthru
    _
  // Predicated region
  $region10: #{_forecast_impl.1} parent=0 // pred_check
    _
  $region11: #{_forecast_impl.1} parent=0 // pred_check_branch
    %15 = sbr.rel (0) target = $region13
  $region12: #{_forecast_impl.1} parent=0 // pred_region
    _
  $region13: #{_forecast_impl.1} parent=0 // pred_fallthru
    _
  // Predicated region
  $region14: #{_forecast_impl.1} parent=0 // pred_check
    _
  $region15: #{_forecast_impl.1} parent=0 // pred_check_branch
    %17 = sbr.rel (0) target = $region17
  $region16: #{_forecast_impl.1} parent=0 // pred_region
    _
  $region17: #{_forecast_impl.1} parent=0 // pred_fallthru
    _
  // Predicated region
  $region18: #{_forecast_impl.1} parent=0 // pred_check
    _
  $region19: #{_forecast_impl.1} parent=0 // pred_check_branch
    %19 = sbr.rel (0) target = $region21
  $region20: #{_forecast_impl.1} parent=0 // pred_region
    _
  $region21: #{_forecast_impl.1} parent=0 // pred_fallthru
    _
  %v21 = vld [vmem:[%s1] sm:$0xf]
  %v22 = vld [vmem:[%s3] sm:$0xf]
  %v23 = vld [vmem:[%s3 + $0x4] sm:$0xf]
  %v24 = vld [vmem:[%s3 + $0x8] sm:$0xf]
  %v25 = vld [vmem:[%s3 + $0xc] sm:$0xf]
  %v26 = vld [vmem:[%s3 + $0x10] sm:$0xf]
  %v27 = vld [vmem:[%s3 + $0x14] sm:$0xf]
  %v28 = vld [vmem:[%s3 + $0x18] sm:$0xf]
  %v29 = vld [vmem:[%s3 + $0x1c] sm:$0xf]
  %v30 = vld [vmem:[%s3 + $0x20] sm:$0xf]
  %v31 = vld [vmem:[%s3 + $0x24] sm:$0xf]
  %v32 = vld [vmem:[%s3 + $0x28] sm:$0xf]
  %v33 = vld [vmem:[%s3 + $0x2c] sm:$0xf]
  %v34 = vld [vmem:[%s3 + $0x30] sm:$0xf]
  %v35 = vld [vmem:[%s3 + $0x34] sm:$0xf]
  %v36 = vld [vmem:[%s3 + $0x38] sm:$0xf]
  %v37 = vld [vmem:[%s3 + $0x3c] sm:$0xf]
  %v38 = vld [vmem:[%s4] sm:$0x1]
  %v40 = vlaneseq
  %v41 = vshrl.u32 %v40, 7
  %v42 = vsub.s32 0, %v41
  %v43 = vrot.slane %v38, %v42
  %v61 = vunpack.c.l.b16 %v22
  %v62 = vunpack.c.l.b16 %v23
  %v63 = vunpack.c.l.b16 %v24
  %v64 = vunpack.c.l.b16 %v25
  %v65 = vunpack.c.l.b16 %v26
  %v66 = vunpack.c.l.b16 %v27
  %v67 = vunpack.c.l.b16 %v28
  %v68 = vunpack.c.l.b16 %v29
  %v69 = vunpack.c.l.b16 %v30
  %v70 = vunpack.c.l.b16 %v31
  %v71 = vunpack.c.l.b16 %v32
  %v72 = vunpack.c.l.b16 %v33
  %v73 = vunpack.c.l.b16 %v34
  %v74 = vunpack.c.l.b16 %v35
  %v75 = vunpack.c.l.b16 %v36
  %v76 = vunpack.c.l.b16 %v37
  %v77 = vpack.c.b16 %v62, %v61
  %v78 = vpack.c.b16 %v64, %v63
  %v79 = vpack.c.b16 %v66, %v65
  %v80 = vpack.c.b16 %v68, %v67
  %v81 = vpack.c.b16 %v70, %v69
  %v82 = vpack.c.b16 %v72, %v71
  %v83 = vpack.c.b16 %v74, %v73
  %v84 = vpack.c.b16 %v76, %v75
  %93 = vmatprep.subr.bf16.mxu0 0
  %94 = vmatpush1.bf16.msra.mxu0 %v77
  %95 = vmatprep.subr.bf16.mxu0 0
  %96 = vmatpush1.bf16.msra.mxu0 %v78
  %97 = vmatprep.subr.bf16.mxu0 0
  %98 = vmatpush1.bf16.msra.mxu0 %v79
  %99 = vmatprep.subr.bf16.mxu0 0
  %100 = vmatpush1.bf16.msra.mxu0 %v80
  %101 = vmatprep.subr.bf16.mxu0 0
  %102 = vmatpush1.bf16.msra.mxu0 %v81
  %103 = vmatprep.subr.bf16.mxu0 0
  %104 = vmatpush1.bf16.msra.mxu0 %v82
  %105 = vmatprep.subr.bf16.mxu0 0
  %106 = vmatpush1.bf16.msra.mxu0 %v83
  %107 = vmatprep.subr.bf16.mxu0 0
  %108 = vmatpush1.bf16.msra.mxu0 %v84
  %109 = vmatprep.subr.bf16.mxu0 0
  %110 = vmatpush1.bf16.msra.mxu0 0
  %111 = vmatprep.subr.bf16.mxu0 0
  %112 = vmatpush1.bf16.msra.mxu0 0
  %113 = vmatprep.subr.bf16.mxu0 0
  %114 = vmatpush1.bf16.msra.mxu0 0
  %115 = vmatprep.subr.bf16.mxu0 0
  %116 = vmatpush1.bf16.msra.mxu0 0
  %117 = vmatprep.subr.bf16.mxu0 0
  %118 = vmatpush1.bf16.msra.mxu0 0
  %119 = vmatprep.subr.bf16.mxu0 0
  %120 = vmatpush1.bf16.msra.mxu0 0
  %121 = vmatprep.subr.bf16.mxu0 0
  %122 = vmatpush1.bf16.msra.mxu0 0
  %123 = vmatprep.subr.bf16.mxu0 0
  %124 = vmatpush1.bf16.msra.mxu0 0
  %125 = vmatprep.mubr.bf16.mxu0 0
  %126 = vmatmul.mubr.bf16.gmra.mrb[0].mxu0 %v21
  %v127 = vpop.f32.mrb[0].mxu0
  %v128 = vadd.f32 %v43, %v127
  %v129 = vpop.f32.mrb[0].mxu0
  %v130 = vpop.f32.mrb[0].mxu0
  %v131 = vpop.f32.mrb[0].mxu0
  %132 = vdwg.mxu0
  %v133 = vld [vmem:[%s2] sm:$0xf]
  %v134 = vld [vmem:[%s2 + $0x4] sm:$0xf]
  %v135 = vld [vmem:[%s2 + $0x8] sm:$0xf]
  %v136 = vld [vmem:[%s2 + $0xc] sm:$0xf]
  %v137 = vld [vmem:[%s2 + $0x10] sm:$0xf]
  %v138 = vld [vmem:[%s0] sm:$0xff]
  %v139 = vpack.c.bf16 %v138, %v138
  %v145 = vunpack.c.l.b16 %v133
  %v146 = vunpack.c.l.b16 %v134
  %v147 = vunpack.c.l.b16 %v135
  %v148 = vunpack.c.l.b16 %v136
  %v149 = vunpack.c.l.b16 %v137
  %v150 = vpack.c.b16 %v146, %v145
  %v151 = vpack.c.b16 %v148, %v147
  %v152 = vpack.c.b16 %v149, %v149
  %vm155 = vcmask 326656
  %v157 = vsel %vm155, %v139, 0
  %vm159 = vcmask 1043456
  %v161 = vsel %vm159, %v152, 0
  %163 = vmatprep.subr.bf16.mxu0 0
  %164 = vmatpush1.bf16.msra.mxu0 %v150
  %165 = vmatprep.subr.bf16.mxu0 0
  %166 = vmatpush1.bf16.msra.mxu0 %v151
  %167 = vmatprep.subr.bf16.mxu0 0
  %168 = vmatpush1.bf16.msra.mxu0 %v161
  %169 = vmatprep.subr.bf16.mxu0 0
  %170 = vmatpush1.bf16.msra.mxu0 0
  %171 = vmatprep.subr.bf16.mxu0 0
  %172 = vmatpush1.bf16.msra.mxu0 0
  %173 = vmatprep.subr.bf16.mxu0 0
  %174 = vmatpush1.bf16.msra.mxu0 0
  %175 = vmatprep.subr.bf16.mxu0 0
  %176 = vmatpush1.bf16.msra.mxu0 0
  %177 = vmatprep.subr.bf16.mxu0 0
  %178 = vmatpush1.bf16.msra.mxu0 0
  %179 = vmatprep.subr.bf16.mxu0 0
  %180 = vmatpush1.bf16.msra.mxu0 0
  %181 = vmatprep.subr.bf16.mxu0 0
  %182 = vmatpush1.bf16.msra.mxu0 0
  %183 = vmatprep.subr.bf16.mxu0 0
  %184 = vmatpush1.bf16.msra.mxu0 0
  %185 = vmatprep.subr.bf16.mxu0 0
  %186 = vmatpush1.bf16.msra.mxu0 0
  %187 = vmatprep.subr.bf16.mxu0 0
  %188 = vmatpush1.bf16.msra.mxu0 0
  %189 = vmatprep.subr.bf16.mxu0 0
  %190 = vmatpush1.bf16.msra.mxu0 0
  %191 = vmatprep.subr.bf16.mxu0 0
  %192 = vmatpush1.bf16.msra.mxu0 0
  %193 = vmatprep.subr.bf16.mxu0 0
  %194 = vmatpush1.bf16.msra.mxu0 0
  %195 = vmatprep.mubr.bf16.mxu0 0
  %196 = vmatmul.mubr.bf16.gmra.mrb[0].mxu0 %v157
  %v197 = vpop.f32.mrb[0].mxu0
  %v198 = vadd.f32 0.0, %v197
  %v199 = vpop.f32.mrb[0].mxu0
  %v200 = vpop.f32.mrb[0].mxu0
  %v201 = vpop.f32.mrb[0].mxu0
  %202 = vdwg.mxu0
  %v203 = vadd.f32 %v128, %v198
  %204 = vst [vmem:[%s5] sm:$0xff] %v203
  // Predicated region
  $region22: #{_forecast_impl.1} parent=0 // pred_check
    _
  $region23: #{_forecast_impl.1} parent=0 // pred_check_branch
    %206 = sbr.rel (0) target = $region25
  $region24: #{_forecast_impl.1} parent=0 // pred_region
    _
  $region25: #{_forecast_impl.1} parent=0 // pred_fallthru
    _
  // Predicated region
  $region26: #{_forecast_impl.1} parent=0 // pred_check
    _
  $region27: #{_forecast_impl.1} parent=0 // pred_check_branch
    %208 = sbr.rel (0) target = $region29
  $region28: #{_forecast_impl.1} parent=0 // pred_region
    _
  $region29: #{_forecast_impl.1} parent=0 // pred_fallthru
    _

</llo_original>
